<compile_context>
chip_gen: v6e
topology: v6e:2x2x1
jax: 0.10.0
libtpu: 0.0.40
codegen_flags: <defaults>
</compile_context>

<pallas_src>
import jax
import jax.numpy as jnp
from jax.experimental import pallas as pl
from jax.experimental.pallas import tpu as pltpu


_TARGET_STEP_BYTES = 1 << 20   # ~1 MiB of in+out HBM traffic per grid step
_MAX_STEP_BYTES = 4 << 20      # keep double-buffered VMEM well under limits
_MAX_TL = 8192                 # lane-tile cap


def _outconv_kernel(x_ref, w_ref, b_ref, o_ref):
    # x_ref: (Bblk, Cin, TL)   input tile, L on the lane axis
    # w_ref: (Cout, Cin)       resident weights (f32)
    # b_ref: (Cout, 1)         resident bias (f32)
    # o_ref: (Bblk, Cout, TL)  output tile (unpadded Cout)
    w = w_ref[...]
    b = b_ref[...]
    # Static unroll over the (small) batch block: each iteration is one MXU
    # matmul (Cout,Cin)@(Cin,TL) + broadcast bias, stored lane-dense.
    for i in range(x_ref.shape[0]):
        acc = jnp.dot(w, x_ref[i], preferred_element_type=jnp.float32)
        o_ref[i] = (acc + b).astype(o_ref.dtype)


def _round_up(n, m):
    return ((n + m - 1) // m) * m


def _pick_tiles(B, Cin, Cout, L_p, in_itemsize, out_itemsize):
    """Pick (batch_block, l_tile) targeting ~1 MiB of HBM traffic per step."""
    row_bytes_per_l = Cin * in_itemsize + Cout * out_itemsize
    tl_cap = (_TARGET_STEP_BYTES // max(1, row_bytes_per_l)) // 128 * 128
    tl_cap = max(128, min(_MAX_TL, tl_cap))
    # Largest 128-multiple divisor of L_p that fits the byte budget.
    tl = 128
    d = 128
    while d <= min(tl_cap, L_p):
        if L_p % d == 0:
            tl = d
        d += 128
    # Block batch rows if a single (Cin+Cout, TL) slab is still small.
    step_bytes = row_bytes_per_l * tl
    bblk = 1
    for cand in range(2, B + 1):
        if cand * step_bytes > _MAX_STEP_BYTES:
            break
        if B % cand != 0:
            continue
        bblk = cand
        if cand * step_bytes >= _TARGET_STEP_BYTES:
            break
    return bblk, tl


def out_conv(x, weight, bias, *, l_tile=None, batch_block=None):
    """1x1 Conv1d forward, NCL in / NCL out (matches PyTorch Conv1d).

    Args:
      x:      (B, C_in, L)      float32 or bfloat16
      weight: (C_out, C_in, 1)  float32 (PyTorch Conv1d weight shape)
      bias:   (C_out,)          float32
    Returns:
      (B, C_out, L) in x.dtype
    """
    B, Cin, L = x.shape
    Cout = weight.shape[0]
    out_dtype = x.dtype
    in_itemsize = jnp.dtype(x.dtype).itemsize
    out_itemsize = jnp.dtype(out_dtype).itemsize

    # Keep parameters resident in f32 (tiny), independent of activation dtype.
    w2 = weight[:, :, 0].astype(jnp.float32)                  # (Cout, Cin)
    b2 = bias.astype(jnp.float32).reshape(Cout, 1)            # (Cout, 1)

    # Pad L up to a multiple of 128 so lane tiles are unmasked; padded columns
    # are computed (cheap) and sliced off at the end.
    L_p = _round_up(L, 128)
    if L_p != L:
        x = jnp.pad(x, ((0, 0), (0, 0), (0, L_p - L)))

    bblk_auto, tl_auto = _pick_tiles(B, Cin, Cout, L_p, in_itemsize, out_itemsize)
    TL = l_tile if l_tile is not None else tl_auto
    Bblk = batch_block if batch_block is not None else bblk_auto
    assert L_p % TL == 0, "L tile must divide padded L"
    assert B % Bblk == 0, "batch block must divide B"
    grid = (B // Bblk, L_p // TL)

    cost = pl.CostEstimate(
        flops=2 * B * Cout * Cin * L_p,
        transcendentals=0,
        bytes_accessed=(B * Cin * L_p * in_itemsize
                        + B * Cout * L_p * out_itemsize
                        + Cout * Cin * 4 + Cout * 4),
    )

    out_p = pl.pallas_call(
        _outconv_kernel,
        out_shape=jax.ShapeDtypeStruct((B, Cout, L_p), out_dtype),
        grid=grid,
        in_specs=[
            pl.BlockSpec((Bblk, Cin, TL), lambda b, l: (b, 0, l)),  # x tile
            pl.BlockSpec((Cout, Cin), lambda b, l: (0, 0)),         # W (resident)
            pl.BlockSpec((Cout, 1), lambda b, l: (0, 0)),           # bias (resident)
        ],
        out_specs=pl.BlockSpec((Bblk, Cout, TL), lambda b, l: (b, 0, l)),
        compiler_params=pltpu.CompilerParams(
            dimension_semantics=("parallel", "parallel")),
        cost_estimate=cost,
    )(x, w2, b2)

    if L_p != L:
        out_p = out_p[:, :, :L]
    return out_p


if __name__ == "__main__":
    key = jax.random.PRNGKey(0)
    k_x, k_w, k_b = jax.random.split(key, 3)

    B, in_ch, out_ch, L = 2, 4, 3, 16
    x = jax.random.normal(k_x, (B, in_ch, L), dtype=jnp.float32)
    # Deterministic synthetic parameters (shapes per nn.Conv1d(in_ch, out_ch, 1)).
    weight = jax.random.normal(k_w, (out_ch, in_ch, 1), dtype=jnp.float32) * 0.1
    bias = jax.random.normal(k_b, (out_ch,), dtype=jnp.float32) * 0.1

    out = out_conv(x, weight, bias)
    out = jax.block_until_ready(out)

    # Pure-JAX reference (same semantics as torch Conv1d with kernel_size=1).
    ref = jnp.einsum("oc,bcl->bol", weight[:, :, 0], x) + bias[None, :, None]
    assert out.shape == (B, out_ch, L)
    assert jnp.allclose(out, ref, atol=1e-5, rtol=1e-5)

    print("KERNEL_OK")
</pallas_src>

<mosaic_0001>
module attributes {stable_mosaic.version = 11 : i64} {
  func.func @_outconv_kernel(%arg0: i32, %arg1: i32, %arg2: memref<2x4x128xf32, #tpu.memory_space<vmem>>, %arg3: memref<3x4xf32, #tpu.memory_space<vmem>>, %arg4: memref<3x1xf32, #tpu.memory_space<vmem>>, %arg5: memref<2x3x128xf32, #tpu.memory_space<vmem>>) attributes {dimension_semantics = [#tpu.dimension_semantics<parallel>, #tpu.dimension_semantics<parallel>], iteration_bounds = array<i64: 1, 1>, scalar_prefetch = 0 : i64, scratch_operands = 0 : i64, tpu.core_type = #tpu.core_type<tc>, window_params = [{transform_indices = @transform_0, window_bounds = array<i64: 2, 4, 128>}, {pipeline_mode = #tpu.pipeline_mode<synchronous>, transform_indices = @transform_1, window_bounds = array<i64: 3, 4>}, {pipeline_mode = #tpu.pipeline_mode<synchronous>, transform_indices = @transform_2, window_bounds = array<i64: 3, 1>}, {transform_indices = @transform_3, window_bounds = array<i64: 2, 3, 128>}]} {
    %c0 = arith.constant 0 : index
    %c0_0 = arith.constant 0 : index
    %0 = vector.load %arg3[%c0, %c0_0] : memref<3x4xf32, #tpu.memory_space<vmem>>, vector<3x4xf32>
    %c0_1 = arith.constant 0 : index
    %c0_2 = arith.constant 0 : index
    %1 = vector.load %arg4[%c0_1, %c0_2] : memref<3x1xf32, #tpu.memory_space<vmem>>, vector<3x1xf32>
    %c0_3 = arith.constant 0 : index
    %c0_4 = arith.constant 0 : index
    %c0_5 = arith.constant 0 : index
    %2 = vector.load %arg2[%c0_3, %c0_4, %c0_5] : memref<2x4x128xf32, #tpu.memory_space<vmem>>, vector<1x4x128xf32>
    %3 = vector.shape_cast %2 : vector<1x4x128xf32> to vector<4x128xf32>
    %cst = arith.constant dense<0.000000e+00> : vector<3x128xf32>
    %4 = tpu.matmul %0, %3, %cst {dimension_numbers = #tpu.dot_dimension_numbers<[1], [0], [0], [1], [0, 0, 1, 1], [], []>} : vector<3x4xf32>, vector<4x128xf32>, vector<3x128xf32> -> vector<3x128xf32>
    %5 = vector.broadcast %1 : vector<3x1xf32> to vector<3x128xf32>
    %6 = arith.addf %4, %5 : vector<3x128xf32>
    %c0_6 = arith.constant 0 : index
    %c0_7 = arith.constant 0 : index
    %c0_8 = arith.constant 0 : index
    %7 = vector.load %arg5[%c0_6, %c0_7, %c0_8] : memref<2x3x128xf32, #tpu.memory_space<vmem>>, vector<1x3x128xf32>
    %8 = vector.shape_cast %7 : vector<1x3x128xf32> to vector<3x128xf32>
    %9 = vector.shape_cast %6 : vector<3x128xf32> to vector<1x3x128xf32>
    tpu.vector_store %arg5[%c0_6, %c0_7, %c0_8], %9 {strides = array<i32>} : memref<2x3x128xf32, #tpu.memory_space<vmem>>, vector<1x3x128xf32>,
    %c1 = arith.constant 1 : index
    %c0_9 = arith.constant 0 : index
    %c0_10 = arith.constant 0 : index
    %10 = vector.load %arg2[%c1, %c0_9, %c0_10] : memref<2x4x128xf32, #tpu.memory_space<vmem>>, vector<1x4x128xf32>
    %11 = vector.shape_cast %10 : vector<1x4x128xf32> to vector<4x128xf32>
    %cst_11 = arith.constant dense<0.000000e+00> : vector<3x128xf32>
    %12 = tpu.matmul %0, %11, %cst_11 {dimension_numbers = #tpu.dot_dimension_numbers<[1], [0], [0], [1], [0, 0, 1, 1], [], []>} : vector<3x4xf32>, vector<4x128xf32>, vector<3x128xf32> -> vector<3x128xf32>
    %13 = vector.broadcast %1 : vector<3x1xf32> to vector<3x128xf32>
    %14 = arith.addf %12, %13 : vector<3x128xf32>
    %c1_12 = arith.constant 1 : index
    %c0_13 = arith.constant 0 : index
    %c0_14 = arith.constant 0 : index
    %15 = vector.load %arg5[%c1_12, %c0_13, %c0_14] : memref<2x3x128xf32, #tpu.memory_space<vmem>>, vector<1x3x128xf32>
    %16 = vector.shape_cast %15 : vector<1x3x128xf32> to vector<3x128xf32>
    %17 = vector.shape_cast %14 : vector<3x128xf32> to vector<1x3x128xf32>
    tpu.vector_store %arg5[%c1_12, %c0_13, %c0_14], %17 {strides = array<i32>} : memref<2x3x128xf32, #tpu.memory_space<vmem>>, vector<1x3x128xf32>,
    return
  }
  func.func @transform_0(%arg0: i32, %arg1: i32) -> (i32, i32, i32) {
    %c0_i32 = arith.constant 0 : i32
    %c0_i32_0 = arith.constant 0 : i32
    return %arg0, %c0_i32, %arg1 : i32, i32, i32
  }
  func.func @transform_1(%arg0: i32, %arg1: i32) -> (i32, i32) {
    %c0_i32 = arith.constant 0 : i32
    %c0_i32_0 = arith.constant 0 : i32
    %c0_i32_1 = arith.constant 0 : i32
    return %c0_i32, %c0_i32_0 : i32, i32
  }
  func.func @transform_2(%arg0: i32, %arg1: i32) -> (i32, i32) {
    %c0_i32 = arith.constant 0 : i32
    %c0_i32_0 = arith.constant 0 : i32
    %c0_i32_1 = arith.constant 0 : i32
    return %c0_i32, %c0_i32_0 : i32, i32
  }
  func.func @transform_3(%arg0: i32, %arg1: i32) -> (i32, i32, i32) {
    %c0_i32 = arith.constant 0 : i32
    %c0_i32_0 = arith.constant 0 : i32
    return %arg0, %c0_i32, %arg1 : i32, i32, i32
  }
}

</mosaic_0001>

<llo_original>
// kernel: tpu_custom_call.1
$region0: #{tpu_custom_call.1}
  #allocation0 [shape = 'u32[]', space=smem, size = 0x4, offset = 0x4, fixed_abs, tag = 'smem constant byte address 0x4 - core index']
  #allocation1 [shape = 'u32[144,128]{1,0:T(1,128)}', space=vmem, size = 0x12000, scoped, tag = 'internal scratch']
  %s0 = inlined_call_operand.hbm [shape: f32[2,4,128], index: 0, kind: input, shape index: {}]
  %s1 = inlined_call_operand.vmem [shape: f32[3,4], index: 1, kind: input, shape index: {}]
  %s2 = inlined_call_operand.vmem [shape: f32[3,1], index: 2, kind: input, shape index: {}]
  %s3 = inlined_call_operand.vmem [shape: f32[2,3,128], index: 3, kind: output, shape index: {}]
  %s4 = sld [smem:[#allocation0]]
  $region26: #{tpu_custom_call.1} parent=0
    _
  %s6 = ssub.s32 1, %s4
  %s7 = scalar_select 0, %s6, %s4
  $region1: #{tpu_custom_call.1} parent=0
    #allocation2 [shape = 'u8[4096]{0}', space=vmem, size = 0x1000, scoped, tag = 'input window, operand 0, single buffered']
    #allocation3 [shape = 's32[1]{0}', space=sflag, size = 0x4, scoped, tag = 'scoped memory for tpu_custom_call.1']
    %8 = vsyncpa [#allocation3], 0
    // Predicated region
    $region2: #{tpu_custom_call.1} parent=1 // pred_check
      _
    $region3: #{tpu_custom_call.1} parent=1 // pred_check_branch
      %10 = sbr.rel (0) target = $region5
    $region4: #{tpu_custom_call.1} parent=1 // pred_region
      %s12 = ssub.s32 128, 128
      %13 = vsyncadd [#allocation3], %s12
      %s14 = sshll.u32 [#allocation2], 4
      %s15 = int_to_ptr.vmem [resolvable:$true] %s14
      %20 = dma.hbm_to_vmem [thread:$0]  %s0, 128, %s15, [#allocation3], 64, 64, 4
    $region5: #{tpu_custom_call.1} parent=1 // pred_fallthru
      _
    // Predicated region
    $region6: #{tpu_custom_call.1} parent=1 // pred_check
      _
    $region7: #{tpu_custom_call.1} parent=1 // pred_check_branch
      %22 = sbr.rel (0) target = $region9
    $region8: #{tpu_custom_call.1} parent=1 // pred_region
      _
    $region9: #{tpu_custom_call.1} parent=1 // pred_fallthru
      _
    // Predicated region
    $region10: #{tpu_custom_call.1} parent=1 // pred_check
      _
    $region11: #{tpu_custom_call.1} parent=1 // pred_check_branch
      %24 = sbr.rel (0) target = $region13
    $region12: #{tpu_custom_call.1} parent=1 // pred_region
      _
    $region13: #{tpu_custom_call.1} parent=1 // pred_fallthru
      _
    // Predicated region
    $region14: #{tpu_custom_call.1} parent=1 // pred_check
      _
    $region15: #{tpu_custom_call.1} parent=1 // pred_check_branch
      %26 = sbr.rel (0) target = $region17
    $region16: #{tpu_custom_call.1} parent=1 // pred_region
      %27 = dma.done [#allocation3], 128
    $region17: #{tpu_custom_call.1} parent=1 // pred_fallthru
      _
    %v28 = vld [vmem:[%s1] sm:$0x7]
    %v29 = vld [vmem:[%s2] sm:$0x7]
    %v30 = vld [vmem:[#allocation2] sm:$0xf]
    %32 = vset.pattern.permute.xlu0 0
    %33 = vperm.xlu0 %32, %v29
    %v34 = vpop.permute.xlu0 %33
    %vm36 = vcmask 31744
    %v38 = vsel %vm36, %v28, 0
    %vm40 = vcmask 1043456
    %v42 = vsel %vm40, %v30, 0
    %44 = vmatprep.subr.mxu0 0.0
    %45 = vmatpush1.msra.mxu0 0.0
    %46 = vmatprep.subr.mxu0 0.0
    %47 = vmatpush1.msra.mxu0 0.0
    %48 = vmatprep.subr.mxu0 0.0
    %49 = vmatpush1.msra.mxu0 0.0
    %50 = vmatprep.subr.mxu0 0.0
    %51 = vmatpush1.msra.mxu0 0.0
    %52 = vmatprep.subr.mxu0 0.0
    %53 = vmatpush1.msra.mxu0 0.0
    %54 = vmatprep.subr.mxu0 0.0
    %55 = vmatpush1.msra.mxu0 0.0
    %56 = vmatprep.subr.mxu0 0.0
    %57 = vmatpush1.msra.mxu0 0.0
    %58 = vmatprep.subr.mxu0 0.0
    %59 = vmatpush1.msra.mxu0 0.0
    %60 = vmatprep.subr.mxu0 0.0
    %61 = vmatpush1.msra.mxu0 0.0
    %62 = vmatprep.subr.mxu0 0.0
    %63 = vmatpush1.msra.mxu0 0.0
    %64 = vmatprep.subr.mxu0 0.0
    %65 = vmatpush1.msra.mxu0 0.0
    %66 = vmatprep.subr.mxu0 0.0
    %67 = vmatpush1.msra.mxu0 0.0
    %68 = vmatprep.subr.mxu0 0.0
    %69 = vmatpush1.msra.mxu0 0.0
    %70 = vmatprep.subr.mxu0 0.0
    %71 = vmatpush1.msra.mxu0 0.0
    %72 = vmatprep.subr.mxu0 0.0
    %73 = vmatpush1.msra.mxu0 0.0
    %74 = vmatprep.subr.mxu0 0.0
    %75 = vmatpush1.msra.mxu0 %v42
    %76 = vmatprep.subr.mxu0 0.0
    %77 = vmatpush2.msra.mxu0 0.0
    %78 = vmatprep.subr.mxu0 0.0
    %79 = vmatpush2.msra.mxu0 0.0
    %80 = vmatprep.subr.mxu0 0.0
    %81 = vmatpush2.msra.mxu0 0.0
    %82 = vmatprep.subr.mxu0 0.0
    %83 = vmatpush2.msra.mxu0 0.0
    %84 = vmatprep.subr.mxu0 0.0
    %85 = vmatpush2.msra.mxu0 0.0
    %86 = vmatprep.subr.mxu0 0.0
    %87 = vmatpush2.msra.mxu0 0.0
    %88 = vmatprep.subr.mxu0 0.0
    %89 = vmatpush2.msra.mxu0 0.0
    %90 = vmatprep.subr.mxu0 0.0
    %91 = vmatpush2.msra.mxu0 0.0
    %92 = vmatprep.subr.mxu0 0.0
    %93 = vmatpush2.msra.mxu0 0.0
    %94 = vmatprep.subr.mxu0 0.0
    %95 = vmatpush2.msra.mxu0 0.0
    %96 = vmatprep.subr.mxu0 0.0
    %97 = vmatpush2.msra.mxu0 0.0
    %98 = vmatprep.subr.mxu0 0.0
    %99 = vmatpush2.msra.mxu0 0.0
    %100 = vmatprep.subr.mxu0 0.0
    %101 = vmatpush2.msra.mxu0 0.0
    %102 = vmatprep.subr.mxu0 0.0
    %103 = vmatpush2.msra.mxu0 0.0
    %104 = vmatprep.subr.mxu0 0.0
    %105 = vmatpush2.msra.mxu0 0.0
    %106 = vmatprep.subr.mxu0 0.0
    %107 = vmatpush2.msra.mxu0 0.0
    %108 = vmatprep.mubr.f32.mxu0 0.0
    %109 = vmatmul.mubr.f32.gmra.mxu0 %v38
    %v110 = vpop.f32.mrf.mxu0
    %v111 = vadd.f32 %v34, %v110
    %v112 = vpop.f32.mrf.mxu0
    %113 = vdwg.mxu0
    %114 = vst [vmem:[%s3] sm:$0x7] %v111
    %s115 = scalar_lea.vmem [#allocation2], 4
    %v116 = vld [vmem:[%s115] sm:$0xf]
    %v118 = vsel %vm40, %v116, 0
    %120 = vmatprep.subr.mxu0 0.0
    %121 = vmatpush1.msra.mxu0 0.0
    %122 = vmatprep.subr.mxu0 0.0
    %123 = vmatpush1.msra.mxu0 0.0
    %124 = vmatprep.subr.mxu0 0.0
    %125 = vmatpush1.msra.mxu0 0.0
    %126 = vmatprep.subr.mxu0 0.0
    %127 = vmatpush1.msra.mxu0 0.0
    %128 = vmatprep.subr.mxu0 0.0
    %129 = vmatpush1.msra.mxu0 0.0
    %130 = vmatprep.subr.mxu0 0.0
    %131 = vmatpush1.msra.mxu0 0.0
    %132 = vmatprep.subr.mxu0 0.0
    %133 = vmatpush1.msra.mxu0 0.0
    %134 = vmatprep.subr.mxu0 0.0
    %135 = vmatpush1.msra.mxu0 0.0
    %136 = vmatprep.subr.mxu0 0.0
    %137 = vmatpush1.msra.mxu0 0.0
    %138 = vmatprep.subr.mxu0 0.0
    %139 = vmatpush1.msra.mxu0 0.0
    %140 = vmatprep.subr.mxu0 0.0
    %141 = vmatpush1.msra.mxu0 0.0
    %142 = vmatprep.subr.mxu0 0.0
    %143 = vmatpush1.msra.mxu0 0.0
    %144 = vmatprep.subr.mxu0 0.0
    %145 = vmatpush1.msra.mxu0 0.0
    %146 = vmatprep.subr.mxu0 0.0
    %147 = vmatpush1.msra.mxu0 0.0
    %148 = vmatprep.subr.mxu0 0.0
    %149 = vmatpush1.msra.mxu0 0.0
    %150 = vmatprep.subr.mxu0 0.0
    %151 = vmatpush1.msra.mxu0 %v118
    %152 = vmatprep.subr.mxu0 0.0
    %153 = vmatpush2.msra.mxu0 0.0
    %154 = vmatprep.subr.mxu0 0.0
    %155 = vmatpush2.msra.mxu0 0.0
    %156 = vmatprep.subr.mxu0 0.0
    %157 = vmatpush2.msra.mxu0 0.0
    %158 = vmatprep.subr.mxu0 0.0
    %159 = vmatpush2.msra.mxu0 0.0
    %160 = vmatprep.subr.mxu0 0.0
    %161 = vmatpush2.msra.mxu0 0.0
    %162 = vmatprep.subr.mxu0 0.0
    %163 = vmatpush2.msra.mxu0 0.0
    %164 = vmatprep.subr.mxu0 0.0
    %165 = vmatpush2.msra.mxu0 0.0
    %166 = vmatprep.subr.mxu0 0.0
    %167 = vmatpush2.msra.mxu0 0.0
    %168 = vmatprep.subr.mxu0 0.0
    %169 = vmatpush2.msra.mxu0 0.0
    %170 = vmatprep.subr.mxu0 0.0
    %171 = vmatpush2.msra.mxu0 0.0
    %172 = vmatprep.subr.mxu0 0.0
    %173 = vmatpush2.msra.mxu0 0.0
    %174 = vmatprep.subr.mxu0 0.0
    %175 = vmatpush2.msra.mxu0 0.0
    %176 = vmatprep.subr.mxu0 0.0
    %177 = vmatpush2.msra.mxu0 0.0
    %178 = vmatprep.subr.mxu0 0.0
    %179 = vmatpush2.msra.mxu0 0.0
    %180 = vmatprep.subr.mxu0 0.0
    %181 = vmatpush2.msra.mxu0 0.0
    %182 = vmatprep.subr.mxu0 0.0
    %183 = vmatpush2.msra.mxu0 0.0
    %184 = vmatprep.mubr.f32.mxu0 0.0
    %185 = vmatmul.mubr.f32.gmra.mxu0 %v38
    %v186 = vpop.f32.mrf.mxu0
    %v187 = vadd.f32 %v34, %v186
    %v188 = vpop.f32.mrf.mxu0
    %189 = vdwg.mxu0
    %s190 = scalar_lea.vmem %s3, 4
    %191 = vst [vmem:[%s190] sm:$0x7] %v187
    // Predicated region
    $region18: #{tpu_custom_call.1} parent=1 // pred_check
      _
    $region19: #{tpu_custom_call.1} parent=1 // pred_check_branch
      %193 = sbr.rel (0) target = $region21
    $region20: #{tpu_custom_call.1} parent=1 // pred_region
      _
    $region21: #{tpu_custom_call.1} parent=1 // pred_fallthru
      _
    // Predicated region
    $region22: #{tpu_custom_call.1} parent=1 // pred_check
      _
    $region23: #{tpu_custom_call.1} parent=1 // pred_check_branch
      %195 = sbr.rel (0) target = $region25
    $region24: #{tpu_custom_call.1} parent=1 // pred_region
      _
    $region25: #{tpu_custom_call.1} parent=1 // pred_fallthru
      _
    %196 = vsyncpa [#allocation3], 1

</llo_original>
